<compile_context>
chip_gen: v7x
topology: tpu7x:2x2x1
jax: 0.10.0
libtpu: 0.0.40
codegen_flags: <defaults>
</compile_context>

<pallas_src>
import jax
import jax.numpy as jnp
from jax import lax
from jax.experimental import pallas as pl
from jax.experimental.pallas import tpu as pltpu


def _round_up(a, b):
    return -(-a // b) * b


def _cdiv(a, b):
    return -(-a // b)


def _vmem_capacity_bytes():
    try:
        return int(pltpu.get_tpu_info().vmem_capacity_bytes)
    except Exception:
        return 64 * 1024 * 1024  # conservative default (v7x per-TensorCore VMEM)


def _channel_perceptron_kernel(x_ref, w_ref, shift_ref, o_ref):
    """One batch tile of the grouped 1x1-conv perceptron with folded inference BN.

    x_ref:     (TB, S*Dp)   lane-dense batch tile (Dp = D padded to a multiple of 128)
    w_ref:     (S, Dp, Dp)  per-shareset (d_in, d_out) weights, BN scale already folded
    shift_ref: (1, S*Dp)    folded BN shift (f32), broadcast over batch rows
    o_ref:     (TB, S*Dp)
    """
    n_sets, dp, _ = w_ref.shape
    for g in range(n_sets):       # S is small & static; offsets are 128-aligned constants
        lo = g * dp               # multiple of 128 -> unmasked, lane-aligned loads/stores
        ys = jnp.dot(x_ref[:, lo:lo + dp], w_ref[g],
                     preferred_element_type=jnp.float32)
        o_ref[:, lo:lo + dp] = (ys + shift_ref[:, lo:lo + dp]).astype(o_ref.dtype)


def channel_perceptron(x, conv_weight, bn_gamma, bn_beta, bn_mean, bn_var,
                       *, eps=1e-5, max_batch_tile=1024):
    """Forward of RepMLP ChannelPerceptron (grouped 1x1 conv FC3 + BatchNorm2d, eval mode).

    x:           (nc_s, s, h, w)
    conv_weight: (s*h*w, h*w, 1, 1)   torch grouped-Conv2d weight layout
    Returns (nc_s, s, h, w), matching the torch module in eval mode.
    """
    ncs, s, h, w = x.shape
    d = h * w
    assert conv_weight.shape == (s * d, d, 1, 1), conv_weight.shape
    d_pad = _round_up(d, 128)          # lane-align each shareset's token block

    # ---- trace-time weight prep (done once, outside the hot loop) -------------------
    # grouped-conv weight (g, d_out, d_in) -> pre-transposed (g, d_in, d_out) so the
    # kernel runs a canonical xs @ W; fold the inference-BN scale into output columns.
    scale = (bn_gamma / jnp.sqrt(bn_var + eps)).astype(jnp.float32)
    shift = (bn_beta - bn_mean * scale).astype(jnp.float32)
    wio = jnp.transpose(conv_weight.reshape(s, d, d), (0, 2, 1)).astype(jnp.float32)
    wio = wio * scale[:, None, None]
    if d_pad != d:
        wio = jnp.pad(wio, ((0, 0), (0, d_pad - d), (0, d_pad - d)))
    wio = wio.astype(x.dtype)          # keep MXU inputs in the deployment dtype

    shift_row = jnp.broadcast_to(shift[:, None], (s, d_pad)).reshape(1, s * d_pad)

    # ---- input layout: (ncs, s, h, w) -> lane-dense (ncs, s*d_pad) -------------------
    xf = x.reshape(ncs, s, d)
    if d_pad != d:
        xf = jnp.pad(xf, ((0, 0), (0, 0), (0, d_pad - d)))
    xf = xf.reshape(ncs, s * d_pad)

    # ---- batch tile selection --------------------------------------------------------
    itemsize = jnp.dtype(x.dtype).itemsize
    sub = max(8, 32 // itemsize)                    # 8 f32 / 16 bf16 / 32 int8 sublanes
    row_bytes = s * d_pad * itemsize
    vmem_bytes = _vmem_capacity_bytes()
    tile_cap_bytes = vmem_bytes // 8                # ~16 MiB v5e/v6e, ~8 MiB v7x per tile
    tb = max(sub, (tile_cap_bytes // max(row_bytes, 1)) // sub * sub)
    tb = min(tb, max_batch_tile)
    # keep >= min(4, available) grid steps: both v7x TensorCores get work and the
    # input/output DMA stays double-buffered (never collapse to grid=(1,) if avoidable)
    ncs_sub = _round_up(ncs, sub)
    want_steps = min(4, max(1, ncs_sub // sub))
    tb = min(tb, _round_up(_cdiv(ncs_sub, want_steps), sub))
    tb = max(sub, min(tb, ncs_sub))

    ncs_pad = _round_up(ncs, tb)
    if ncs_pad != ncs:
        xf = jnp.pad(xf, ((0, ncs_pad - ncs), (0, 0)))
    grid = (ncs_pad // tb,)

    # ---- VMEM budget / cost estimate --------------------------------------------------
    tile_bytes = tb * s * d_pad * itemsize
    w_bytes = s * d_pad * d_pad * itemsize
    # 2x(in tile) + 2x(out tile) + 2x(weights) + shift + margin; never below the default.
    vmem_need = 4 * tile_bytes + 2 * w_bytes + 4 * s * d_pad + (8 << 20)
    vmem_limit = int(min(max(vmem_need, 32 << 20), vmem_bytes - (4 << 20)))

    flops = 2.0 * ncs_pad * s * d_pad * d_pad + 1.0 * ncs_pad * s * d_pad
    bytes_accessed = 2.0 * ncs_pad * s * d_pad * itemsize + w_bytes + 4.0 * s * d_pad
    cost = pl.CostEstimate(flops=int(flops), transcendentals=0,
                           bytes_accessed=int(bytes_accessed))

    out = pl.pallas_call(
        _channel_perceptron_kernel,
        out_shape=jax.ShapeDtypeStruct((ncs_pad, s * d_pad), x.dtype),
        grid_spec=pltpu.PrefetchScalarGridSpec(
            num_scalar_prefetch=0,
            grid=grid,
            in_specs=[
                pl.BlockSpec((tb, s * d_pad), lambda b: (b, 0)),       # x: pipelined tiles
                pl.BlockSpec((s, d_pad, d_pad), lambda b: (0, 0, 0)),  # weights: resident
                pl.BlockSpec((1, s * d_pad), lambda b: (0, 0)),        # BN shift: resident
            ],
            out_specs=pl.BlockSpec((tb, s * d_pad), lambda b: (b, 0)),
        ),
        compiler_params=pltpu.CompilerParams(
            dimension_semantics=("parallel",),
            vmem_limit_bytes=vmem_limit,
        ),
        cost_estimate=cost,
    )(xf, wio, shift_row)

    out = out[:ncs].reshape(ncs, s, d_pad)
    if d_pad != d:
        out = out[:, :, :d]
    return out.reshape(ncs, s, h, w)


def _reference(x, conv_weight, bn_gamma, bn_beta, bn_mean, bn_var, eps=1e-5):
    ncs, s, h, w = x.shape
    d = h * w
    wg = conv_weight.reshape(s, d, d)
    xf = x.reshape(ncs, s, d)
    y = jnp.einsum("nsd,sod->nso", xf, wg, precision=lax.Precision.HIGHEST)
    scale = bn_gamma / jnp.sqrt(bn_var + eps)
    shift = bn_beta - bn_mean * scale
    y = y * scale[None, :, None] + shift[None, :, None]
    return y.reshape(ncs, s, h, w)


if __name__ == "__main__":
    hidden_dim = 32  # unused by this module's forward

    configs = [
        # (nc_s, num_sharesets, (h, w))
        (64, 4, (8, 16)),   # D = 128: lane-aligned, 4 pipelined grid steps
        (10, 4, (7, 7)),    # D = 49: real RepMLP token size -> lane padding + batch padding
    ]

    for nc_s, S, (H, W) in configs:
        D = H * W
        key = jax.random.PRNGKey(0)
        kx, kw, kg, kb, km, kv = jax.random.split(key, 6)

        x = jax.random.normal(kx, (nc_s, S, H, W), dtype=jnp.float32)

        # torch Conv2d weight for groups=S: (out_ch, in_ch // groups, 1, 1) = (S*D, D, 1, 1)
        bound = 1.0 / jnp.sqrt(jnp.float32(D))
        conv_w = jax.random.uniform(kw, (S * D, D, 1, 1), jnp.float32, -bound, bound)

        # BatchNorm2d(S) parameters + running stats (inference mode)
        bn_gamma = jax.random.uniform(kg, (S,), jnp.float32, 0.5, 1.5)
        bn_beta = jax.random.uniform(kb, (S,), jnp.float32, -0.5, 0.5)
        bn_mean = jax.random.uniform(km, (S,), jnp.float32, -0.1, 0.1)
        bn_var = jax.random.uniform(kv, (S,), jnp.float32, 0.5, 1.5)

        out = channel_perceptron(x, conv_w, bn_gamma, bn_beta, bn_mean, bn_var)
        out = jax.block_until_ready(out)

        ref = _reference(x, conv_w, bn_gamma, bn_beta, bn_mean, bn_var)
        assert out.shape == (nc_s, S, H, W)
        assert jnp.allclose(out, ref, atol=5e-3, rtol=5e-3), (
            f"mismatch vs reference for config {(nc_s, S, H, W)}")

    print("KERNEL_OK")
</pallas_src>

<mosaic_0001>
module attributes {stable_mosaic.version = 11 : i64} {
  func.func @_channel_perceptron_kernel(%arg0: i32, %arg1: memref<16x512xf32, #tpu.memory_space<vmem>>, %arg2: memref<4x128x128xf32, #tpu.memory_space<vmem>>, %arg3: memref<1x512xf32, #tpu.memory_space<vmem>>, %arg4: memref<16x512xf32, #tpu.memory_space<vmem>>) attributes {dimension_semantics = [#tpu.dimension_semantics<parallel>], iteration_bounds = array<i64: 4>, scalar_prefetch = 0 : i64, scratch_operands = 0 : i64, tpu.core_type = #tpu.core_type<tc>, window_params = [{transform_indices = @transform_0, window_bounds = array<i64: 16, 512>}, {pipeline_mode = #tpu.pipeline_mode<synchronous>, transform_indices = @transform_1, window_bounds = array<i64: 4, 128, 128>}, {pipeline_mode = #tpu.pipeline_mode<synchronous>, transform_indices = @transform_2, window_bounds = array<i64: 1, 512>}, {transform_indices = @transform_3, window_bounds = array<i64: 16, 512>}]} {
    %c0 = arith.constant 0 : index
    %c0_0 = arith.constant 0 : index
    %0 = vector.load %arg1[%c0, %c0_0] : memref<16x512xf32, #tpu.memory_space<vmem>>, vector<16x128xf32>
    %c0_1 = arith.constant 0 : index
    %c0_2 = arith.constant 0 : index
    %c0_3 = arith.constant 0 : index
    %1 = vector.load %arg2[%c0_1, %c0_2, %c0_3] : memref<4x128x128xf32, #tpu.memory_space<vmem>>, vector<1x128x128xf32>
    %2 = vector.shape_cast %1 : vector<1x128x128xf32> to vector<128x128xf32>
    %cst = arith.constant dense<0.000000e+00> : vector<16x128xf32>
    %3 = tpu.matmul %0, %2, %cst {dimension_numbers = #tpu.dot_dimension_numbers<[1], [0], [0], [1], [0, 0, 1, 1], [], []>} : vector<16x128xf32>, vector<128x128xf32>, vector<16x128xf32> -> vector<16x128xf32>
    %c0_4 = arith.constant 0 : index
    %c0_5 = arith.constant 0 : index
    %4 = vector.load %arg3[%c0_4, %c0_5] : memref<1x512xf32, #tpu.memory_space<vmem>>, vector<1x128xf32>
    %5 = vector.broadcast %4 : vector<1x128xf32> to vector<16x128xf32>
    %6 = arith.addf %3, %5 : vector<16x128xf32>
    %c0_6 = arith.constant 0 : index
    %c0_7 = arith.constant 0 : index
    %7 = vector.load %arg4[%c0_6, %c0_7] : memref<16x512xf32, #tpu.memory_space<vmem>>, vector<16x128xf32>
    tpu.vector_store %arg4[%c0_6, %c0_7], %6 {strides = array<i32>} : memref<16x512xf32, #tpu.memory_space<vmem>>, vector<16x128xf32>,
    %c0_8 = arith.constant 0 : index
    %c128 = arith.constant 128 : index
    %8 = vector.load %arg1[%c0_8, %c128] : memref<16x512xf32, #tpu.memory_space<vmem>>, vector<16x128xf32>
    %c1 = arith.constant 1 : index
    %c0_9 = arith.constant 0 : index
    %c0_10 = arith.constant 0 : index
    %9 = vector.load %arg2[%c1, %c0_9, %c0_10] : memref<4x128x128xf32, #tpu.memory_space<vmem>>, vector<1x128x128xf32>
    %10 = vector.shape_cast %9 : vector<1x128x128xf32> to vector<128x128xf32>
    %cst_11 = arith.constant dense<0.000000e+00> : vector<16x128xf32>
    %11 = tpu.matmul %8, %10, %cst_11 {dimension_numbers = #tpu.dot_dimension_numbers<[1], [0], [0], [1], [0, 0, 1, 1], [], []>} : vector<16x128xf32>, vector<128x128xf32>, vector<16x128xf32> -> vector<16x128xf32>
    %c0_12 = arith.constant 0 : index
    %c128_13 = arith.constant 128 : index
    %12 = vector.load %arg3[%c0_12, %c128_13] : memref<1x512xf32, #tpu.memory_space<vmem>>, vector<1x128xf32>
    %13 = vector.broadcast %12 : vector<1x128xf32> to vector<16x128xf32>
    %14 = arith.addf %11, %13 : vector<16x128xf32>
    %c0_14 = arith.constant 0 : index
    %c128_15 = arith.constant 128 : index
    %15 = vector.load %arg4[%c0_14, %c128_15] : memref<16x512xf32, #tpu.memory_space<vmem>>, vector<16x128xf32>
    tpu.vector_store %arg4[%c0_14, %c128_15], %14 {strides = array<i32>} : memref<16x512xf32, #tpu.memory_space<vmem>>, vector<16x128xf32>,
    %c0_16 = arith.constant 0 : index
    %c256 = arith.constant 256 : index
    %16 = vector.load %arg1[%c0_16, %c256] : memref<16x512xf32, #tpu.memory_space<vmem>>, vector<16x128xf32>
    %c2 = arith.constant 2 : index
    %c0_17 = arith.constant 0 : index
    %c0_18 = arith.constant 0 : index
    %17 = vector.load %arg2[%c2, %c0_17, %c0_18] : memref<4x128x128xf32, #tpu.memory_space<vmem>>, vector<1x128x128xf32>
    %18 = vector.shape_cast %17 : vector<1x128x128xf32> to vector<128x128xf32>
    %cst_19 = arith.constant dense<0.000000e+00> : vector<16x128xf32>
    %19 = tpu.matmul %16, %18, %cst_19 {dimension_numbers = #tpu.dot_dimension_numbers<[1], [0], [0], [1], [0, 0, 1, 1], [], []>} : vector<16x128xf32>, vector<128x128xf32>, vector<16x128xf32> -> vector<16x128xf32>
    %c0_20 = arith.constant 0 : index
    %c256_21 = arith.constant 256 : index
    %20 = vector.load %arg3[%c0_20, %c256_21] : memref<1x512xf32, #tpu.memory_space<vmem>>, vector<1x128xf32>
    %21 = vector.broadcast %20 : vector<1x128xf32> to vector<16x128xf32>
    %22 = arith.addf %19, %21 : vector<16x128xf32>
    %c0_22 = arith.constant 0 : index
    %c256_23 = arith.constant 256 : index
    %23 = vector.load %arg4[%c0_22, %c256_23] : memref<16x512xf32, #tpu.memory_space<vmem>>, vector<16x128xf32>
    tpu.vector_store %arg4[%c0_22, %c256_23], %22 {strides = array<i32>} : memref<16x512xf32, #tpu.memory_space<vmem>>, vector<16x128xf32>,
    %c0_24 = arith.constant 0 : index
    %c384 = arith.constant 384 : index
    %24 = vector.load %arg1[%c0_24, %c384] : memref<16x512xf32, #tpu.memory_space<vmem>>, vector<16x128xf32>
    %c3 = arith.constant 3 : index
    %c0_25 = arith.constant 0 : index
    %c0_26 = arith.constant 0 : index
    %25 = vector.load %arg2[%c3, %c0_25, %c0_26] : memref<4x128x128xf32, #tpu.memory_space<vmem>>, vector<1x128x128xf32>
    %26 = vector.shape_cast %25 : vector<1x128x128xf32> to vector<128x128xf32>
    %cst_27 = arith.constant dense<0.000000e+00> : vector<16x128xf32>
    %27 = tpu.matmul %24, %26, %cst_27 {dimension_numbers = #tpu.dot_dimension_numbers<[1], [0], [0], [1], [0, 0, 1, 1], [], []>} : vector<16x128xf32>, vector<128x128xf32>, vector<16x128xf32> -> vector<16x128xf32>
    %c0_28 = arith.constant 0 : index
    %c384_29 = arith.constant 384 : index
    %28 = vector.load %arg3[%c0_28, %c384_29] : memref<1x512xf32, #tpu.memory_space<vmem>>, vector<1x128xf32>
    %29 = vector.broadcast %28 : vector<1x128xf32> to vector<16x128xf32>
    %30 = arith.addf %27, %29 : vector<16x128xf32>
    %c0_30 = arith.constant 0 : index
    %c384_31 = arith.constant 384 : index
    %31 = vector.load %arg4[%c0_30, %c384_31] : memref<16x512xf32, #tpu.memory_space<vmem>>, vector<16x128xf32>
    tpu.vector_store %arg4[%c0_30, %c384_31], %30 {strides = array<i32>} : memref<16x512xf32, #tpu.memory_space<vmem>>, vector<16x128xf32>,
    return
  }
  func.func @transform_0(%arg0: i32) -> (i32, i32) {
    %c0_i32 = arith.constant 0 : i32
    %c0_i32_0 = arith.constant 0 : i32
    return %arg0, %c0_i32 : i32, i32
  }
  func.func @transform_1(%arg0: i32) -> (i32, i32, i32) {
    %c0_i32 = arith.constant 0 : i32
    %c0_i32_0 = arith.constant 0 : i32
    %c0_i32_1 = arith.constant 0 : i32
    %c0_i32_2 = arith.constant 0 : i32
    return %c0_i32, %c0_i32_0, %c0_i32_1 : i32, i32, i32
  }
  func.func @transform_2(%arg0: i32) -> (i32, i32) {
    %c0_i32 = arith.constant 0 : i32
    %c0_i32_0 = arith.constant 0 : i32
    %c0_i32_1 = arith.constant 0 : i32
    return %c0_i32, %c0_i32_0 : i32, i32
  }
  func.func @transform_3(%arg0: i32) -> (i32, i32) {
    %c0_i32 = arith.constant 0 : i32
    %c0_i32_0 = arith.constant 0 : i32
    return %arg0, %c0_i32 : i32, i32
  }
}

</mosaic_0001>

<llo_original>
// kernel: tpu_custom_call.1
$region0: #{tpu_custom_call.1}
  #allocation0 [shape = 'u32[]', space=smem, size = 0x4, offset = 0x4, fixed_abs, tag = 'smem constant byte address 0x4 - core index']
  #allocation1 [shape = 'u32[144,128]{1,0:T(1,128)}', space=vmem, size = 0x12000, scoped, tag = 'internal scratch']
  %s0 = inlined_call_operand.hbm [shape: f32[64,512], index: 0, kind: input, shape index: {}]
  %s1 = inlined_call_operand.hbm [shape: f32[4,128,128], index: 1, kind: input, shape index: {}]
  %s2 = inlined_call_operand.vmem [shape: f32[1,512], index: 2, kind: input, shape index: {}]
  %s3 = inlined_call_operand.hbm [shape: f32[64,512], index: 3, kind: output, shape index: {}]
  %s4 = sld [smem:[#allocation0]]
  $region53: #{tpu_custom_call.1} parent=0
    _
  %s6 = ssub.s32 1, %s4
  %s7 = scalar_select 0, %s6, %s4
  $region1: #{tpu_custom_call.1} parent=0
    #allocation2 [shape = 'u8[65536]{0}', space=vmem, size = 0x10000, scoped, tag = 'input window, operand 0']
    #allocation3 [shape = 's32[2]{0}', space=sflag, size = 0x8, scoped, tag = 'scoped memory for tpu_custom_call.1']
    #allocation4 [shape = 's32[2]{0}', space=sflag, size = 0x8, scoped, tag = 'scoped memory for tpu_custom_call.1']
    #allocation5 [shape = 'u8[262144]{0}', space=vmem, size = 0x40000, scoped, tag = 'input window, operand 1, single buffered']
    #allocation6 [shape = 's32[1]{0}', space=sflag, size = 0x4, scoped, tag = 'scoped memory for tpu_custom_call.1']
    #allocation7 [shape = 'u8[65536]{0}', space=vmem, size = 0x10000, scoped, tag = 'output window, operand 0']
    %8 = vsyncpa [#allocation3], 0
    %s9 = scalar_lea.sflag [#allocation3], 1
    %10 = vsyncpa %s9, 0
    %11 = vsyncpa [#allocation6], 0
    %12 = vsyncpa [#allocation4], 0
    %s13 = scalar_lea.sflag [#allocation4], 1
    %14 = vsyncpa %s13, 0
    loop: start=0, step=1, limit=6
    $region2: #{tpu_custom_call.1} parent=1 // loop_pre_header
      _
    $region3: #{tpu_custom_call.1} parent=1 // loop_header
      %s16 = sphi 0, %s20
      %p17 = scmp.ge.s32.totalorder %s16, 6
      %s26 = sphi 0, %s28
      %s29 = sphi 0, %s26
      %s30 = sphi 0, %s29
      %s46 = sphi 0, %s30
      %s50 = sphi 0, %s50
      %s52 = sphi 0, %s50
      %s53 = sphi 0, %s52
      %s67 = sphi 0, %s53
      %s71 = sphi 0, %s71
      %s73 = sphi 0, %s71
      %s74 = sphi 0, %s73
      %s88 = sphi 0, %s74
      %s94 = sphi 0, %s96
      %s97 = sphi 0, %s94
      %s98 = sphi 0, %s97
      %s114 = sphi 0, %s98
    $region4: #{tpu_custom_call.1} parent=1 // loop_header_branch
      %19 = sbr.rel (%p17) target = $region8
    $region5: #{tpu_custom_call.1} parent=1 // loop_body
      %s21 = ssub.s32 %s16, 1
      %s22 = ssub.s32 %s16, 2
      %s23 = sadd.s32 %s16, 1
      %s24 = ssub.s32 %s16, %s23
      %p25 = scmp.eq.s32.totalorder %s24, 0
      %s27 = sadd.s32 %s26, 1
      %s28 = scalar_select %p25, %s26, %s27
      %p31 = pneg %p25
      %p32 = scmp.eq.s32.totalorder %s16, 3
      %p33 = por %p31, %p32
      %p34 = scmp.ne.s32.totalorder %s26, %s29
      %p35 = scmp.eq.s32.totalorder %s16, 0
      %p36 = por %p34, %p35
      %p37 = scmp.ne.s32.totalorder %s26, %s29
      %p38 = scmp.eq.s32.totalorder %s21, 3
      %p39 = por %p37, %p38
      %p40 = scmp.ne.s32.totalorder %s29, %s30
      %p41 = scmp.eq.s32.totalorder %s21, 0
      %p42 = por %p40, %p41
      %p43 = scmp.ne.s32.totalorder %s29, %s30
      %p44 = scmp.eq.s32.totalorder %s22, 3
      %p45 = por %p43, %p44
      %p47 = scmp.ne.s32.totalorder %s30, %s46
      %p48 = scmp.eq.s32.totalorder %s22, 0
      %p49 = por %p47, %p48
      %s51 = sadd.s32 %s50, 1
      %p54 = scmp.eq.s32.totalorder %s16, 3
      %p55 = scmp.ne.s32.totalorder %s50, %s52
      %p56 = scmp.eq.s32.totalorder %s16, 0
      %p57 = por %p55, %p56
      %p58 = scmp.ne.s32.totalorder %s50, %s52
      %p59 = scmp.eq.s32.totalorder %s21, 3
      %p60 = por %p58, %p59
      %p61 = scmp.ne.s32.totalorder %s52, %s53
      %p62 = scmp.eq.s32.totalorder %s21, 0
      %p63 = por %p61, %p62
      %p64 = scmp.ne.s32.totalorder %s52, %s53
      %p65 = scmp.eq.s32.totalorder %s22, 3
      %p66 = por %p64, %p65
      %p68 = scmp.ne.s32.totalorder %s53, %s67
      %p69 = scmp.eq.s32.totalorder %s22, 0
      %p70 = por %p68, %p69
      %s72 = sadd.s32 %s71, 1
      %p75 = scmp.eq.s32.totalorder %s16, 3
      %p76 = scmp.ne.s32.totalorder %s71, %s73
      %p77 = scmp.eq.s32.totalorder %s16, 0
      %p78 = por %p76, %p77
      %p79 = scmp.ne.s32.totalorder %s71, %s73
      %p80 = scmp.eq.s32.totalorder %s21, 3
      %p81 = por %p79, %p80
      %p82 = scmp.ne.s32.totalorder %s73, %s74
      %p83 = scmp.eq.s32.totalorder %s21, 0
      %p84 = por %p82, %p83
      %p85 = scmp.ne.s32.totalorder %s73, %s74
      %p86 = scmp.eq.s32.totalorder %s22, 3
      %p87 = por %p85, %p86
      %p89 = scmp.ne.s32.totalorder %s74, %s88
      %p90 = scmp.eq.s32.totalorder %s22, 0
      %p91 = por %p89, %p90
      %s92 = ssub.s32 %s16, %s23
      %p93 = scmp.eq.s32.totalorder %s92, 0
      %s95 = sadd.s32 %s94, 1
      %s96 = scalar_select %p93, %s94, %s95
      %p99 = pneg %p93
      %p100 = scmp.eq.s32.totalorder %s16, 3
      %p101 = por %p99, %p100
      %p102 = scmp.ne.s32.totalorder %s94, %s97
      %p103 = scmp.eq.s32.totalorder %s16, 0
      %p104 = por %p102, %p103
      %p105 = scmp.ne.s32.totalorder %s94, %s97
      %p106 = scmp.eq.s32.totalorder %s21, 3
      %p107 = por %p105, %p106
      %p108 = scmp.ne.s32.totalorder %s97, %s98
      %p109 = scmp.eq.s32.totalorder %s21, 0
      %p110 = por %p108, %p109
      %p111 = scmp.ne.s32.totalorder %s97, %s98
      %p112 = scmp.eq.s32.totalorder %s22, 3
      %p113 = por %p111, %p112
      %p115 = scmp.ne.s32.totalorder %s98, %s114
      %p116 = scmp.eq.s32.totalorder %s22, 0
      %p117 = por %p115, %p116
      %p118 = scmp.le.s32.totalorder 1, %s16
      %p119 = scmp.lt.s32.totalorder %s16, 5
      %p120 = pnand %p118, %p119
      %p121 = pneg %p120
      // Predicated region
      $region9: #{tpu_custom_call.1} parent=5 // pred_check
        _
      $region10: #{tpu_custom_call.1} parent=5 // pred_check_branch
        %123 = sbr.rel (%p120) target = $region12
      $region11: #{tpu_custom_call.1} parent=5 // pred_region
        %s124 = ssub.s32 %s16, 1
        // Predicated region
        $region13: #{tpu_custom_call.1} parent=11 // pred_check
          %p125 = pneg %p63
        $region14: #{tpu_custom_call.1} parent=11 // pred_check_branch
          %127 = sbr.rel (%p125) target = $region16
        $region15: #{tpu_custom_call.1} parent=11 // pred_region
          %s129 = ssub.s32 8192, 8192
          %130 = vsyncadd [#allocation6], %s129
          %s131 = sshll.u32 [#allocation5], 4
          %s132 = int_to_ptr.vmem [resolvable:$true] %s131
          %137 = dma.hbm_to_vmem [thread:$0]  %s1, 8192, %s132, [#allocation6], 128, 128, 8
        $region16: #{tpu_custom_call.1} parent=11 // pred_fallthru
          _
        // Predicated region
        $region17: #{tpu_custom_call.1} parent=11 // pred_check
          %p138 = pneg %p84
        $region18: #{tpu_custom_call.1} parent=11 // pred_check_branch
          %140 = sbr.rel (%p138) target = $region20
        $region19: #{tpu_custom_call.1} parent=11 // pred_region
          _
        $region20: #{tpu_custom_call.1} parent=11 // pred_fallthru
          _
      $region12: #{tpu_custom_call.1} parent=5 // pred_fallthru
        _
      %p141 = scmp.lt.s32.totalorder %s16, 4
      // Predicated region
      $region21: #{tpu_custom_call.1} parent=5 // pred_check
        %p142 = pneg %p141
      $region22: #{tpu_custom_call.1} parent=5 // pred_check_branch
        %144 = sbr.rel (%p142) target = $region24
      $region23: #{tpu_custom_call.1} parent=5 // pred_region
        // Predicated region
        $region25: #{tpu_custom_call.1} parent=23 // pred_check
          %p145 = pneg %p36
        $region26: #{tpu_custom_call.1} parent=23 // pred_check_branch
          %147 = sbr.rel (%p145) target = $region28
        $region27: #{tpu_custom_call.1} parent=23 // pred_region
          %s148 = sand.u32 %s26, 1
          %s149 = scalar_lea.sflag [#allocation3], %s148
          %s150 = sand.u32 %s26, 1
          %s151 = smul.addr %s150, 64
          %s152 = scalar_lea.vmem [#allocation2], %s151
          %s153 = smul.u32 2, %s16
          %s155 = ssub.s32 1024, 1024
          %156 = vsyncadd %s149, %s155
          %s157 = smul.addr %s153, 4
          %s158 = smul.addr %s157, 128
          %s159 = scalar_lea.hbm %s0, %s158
          %s160 = sshll.u32 %s152, 4
          %s161 = int_to_ptr.vmem [resolvable:$true] %s160
          %166 = dma.hbm_to_vmem [thread:$0]  %s159, 1024, %s161, %s149, 512, 512, 32
        $region28: #{tpu_custom_call.1} parent=23 // pred_fallthru
          _
      $region24: #{tpu_custom_call.1} parent=5 // pred_fallthru
        _
      %p167 = scmp.le.s32.totalorder 1, %s16
      %p168 = scmp.lt.s32.totalorder %s16, 5
      %p169 = pnand %p167, %p168
      %p170 = pneg %p169
      // Predicated region
      $region29: #{tpu_custom_call.1} parent=5 // pred_check
        _
      $region30: #{tpu_custom_call.1} parent=5 // pred_check_branch
        %172 = sbr.rel (%p169) target = $region32
      $region31: #{tpu_custom_call.1} parent=5 // pred_region
        %s173 = ssub.s32 %s16, 1
        %s174 = sand.u32 %s29, 1
        %s175 = scalar_lea.sflag [#allocation3], %s174
        %s176 = sand.u32 %s29, 1
        %s177 = smul.addr %s176, 64
        %s178 = scalar_lea.vmem [#allocation2], %s177
        // Predicated region
        $region33: #{tpu_custom_call.1} parent=31 // pred_check
          %p179 = pneg %p42
        $region34: #{tpu_custom_call.1} parent=31 // pred_check_branch
          %181 = sbr.rel (%p179) target = $region36
        $region35: #{tpu_custom_call.1} parent=31 // pred_region
          %182 = dma.done %s175, 1024
        $region36: #{tpu_custom_call.1} parent=31 // pred_fallthru
          _
        // Predicated region
        $region37: #{tpu_custom_call.1} parent=31 // pred_check
          %p183 = pneg %p63
        $region38: #{tpu_custom_call.1} parent=31 // pred_check_branch
          %185 = sbr.rel (%p183) target = $region40
        $region39: #{tpu_custom_call.1} parent=31 // pred_region
          %186 = dma.done [#allocation6], 8192
        $region40: #{tpu_custom_call.1} parent=31 // pred_fallthru
          _
        %s187 = sand.u32 %s29, 1
        %s188 = scalar_lea.sflag [#allocation3], %s187
        %s189 = sand.u32 %s29, 1
        %s190 = smul.addr %s189, 64
        %s191 = scalar_lea.vmem [#allocation2], %s190
        %p192 = pneg %p42
        %p193 = pneg %p39
        %p194 = pneg %p63
        %p195 = pneg %p60
        %p196 = pneg %p84
        %p197 = pneg %p81
        %p198 = pneg %p110
        %p199 = pneg %p107
        %s200 = sand.u32 %s97, 1
        %s201 = scalar_lea.sflag [#allocation4], %s200
        %s202 = sand.u32 %s97, 1
        %s203 = smul.addr %s202, 64
        %s204 = scalar_lea.vmem [#allocation7], %s203
        %s205 = smul.u32 2, %s21
        %s206 = smul.u32 2, %s21
        %v207 = vld [vmem:[%s178] sm:$0xff]
        %v208 = vld [vmem:[%s178 + $0x20] sm:$0xff]
        %v209 = vld [vmem:[#allocation5] sm:$0xff]
        %v210 = vld [vmem:[#allocation5 + $0x8] sm:$0xff]
        %v211 = vld [vmem:[#allocation5 + $0x10] sm:$0xff]
        %v212 = vld [vmem:[#allocation5 + $0x18] sm:$0xff]
        %v213 = vld [vmem:[#allocation5 + $0x20] sm:$0xff]
        %v214 = vld [vmem:[#allocation5 + $0x28] sm:$0xff]
        %v215 = vld [vmem:[#allocation5 + $0x30] sm:$0xff]
        %v216 = vld [vmem:[#allocation5 + $0x38] sm:$0xff]
        %v217 = vld [vmem:[#allocation5 + $0x40] sm:$0xff]
        %v218 = vld [vmem:[#allocation5 + $0x48] sm:$0xff]
        %v219 = vld [vmem:[#allocation5 + $0x50] sm:$0xff]
        %v220 = vld [vmem:[#allocation5 + $0x58] sm:$0xff]
        %v221 = vld [vmem:[#allocation5 + $0x60] sm:$0xff]
        %v222 = vld [vmem:[#allocation5 + $0x68] sm:$0xff]
        %v223 = vld [vmem:[#allocation5 + $0x70] sm:$0xff]
        %v224 = vld [vmem:[#allocation5 + $0x78] sm:$0xff]
        %v225 = vld [vmem:[%s2] sm:$0x1]
        %v227 = vlaneseq
        %v228 = vshrl.u32 %v227, 7
        %v229 = vsub.s32 0, %v228
        %v230 = vrot.slane %v225, %v229
        %232 = vmatprep.subr.mxu0 0.0
        %233 = vmatpush1.msra.mxu0 %v209
        %234 = vmatprep.subr.mxu0 0.0
        %235 = vmatpush1.msra.mxu0 %v210
        %236 = vmatprep.subr.mxu0 0.0
        %237 = vmatpush1.msra.mxu0 %v211
        %238 = vmatprep.subr.mxu0 0.0
        %239 = vmatpush1.msra.mxu0 %v212
        %240 = vmatprep.subr.mxu0 0.0
        %241 = vmatpush1.msra.mxu0 %v213
        %242 = vmatprep.subr.mxu0 0.0
        %243 = vmatpush1.msra.mxu0 %v214
        %244 = vmatprep.subr.mxu0 0.0
        %245 = vmatpush1.msra.mxu0 %v215
        %246 = vmatprep.subr.mxu0 0.0
        %247 = vmatpush1.msra.mxu0 %v216
        %248 = vmatprep.subr.mxu0 0.0
        %249 = vmatpush1.msra.mxu0 %v217
        %250 = vmatprep.subr.mxu0 0.0
        %251 = vmatpush1.msra.mxu0 %v218
        %252 = vmatprep.subr.mxu0 0.0
        %253 = vmatpush1.msra.mxu0 %v219
        %254 = vmatprep.subr.mxu0 0.0
        %255 = vmatpush1.msra.mxu0 %v220
        %256 = vmatprep.subr.mxu0 0.0
        %257 = vmatpush1.msra.mxu0 %v221
        %258 = vmatprep.subr.mxu0 0.0
        %259 = vmatpush1.msra.mxu0 %v222
        %260 = vmatprep.subr.mxu0 0.0
        %261 = vmatpush1.msra.mxu0 %v223
        %262 = vmatprep.subr.mxu0 0.0
        %263 = vmatpush1.msra.mxu0 %v224
        %264 = vmatprep.subr.mxu0 0.0
        %265 = vmatpush1.msra.mxu0 0.0
        %266 = vmatprep.subr.mxu0 0.0
        %267 = vmatpush1.msra.mxu0 0.0
        %268 = vmatprep.subr.mxu0 0.0
        %269 = vmatpush1.msra.mxu0 0.0
        %270 = vmatprep.subr.mxu0 0.0
        %271 = vmatpush1.msra.mxu0 0.0
        %272 = vmatprep.subr.mxu0 0.0
        %273 = vmatpush1.msra.mxu0 0.0
        %274 = vmatprep.subr.mxu0 0.0
        %275 = vmatpush1.msra.mxu0 0.0
        %276 = vmatprep.subr.mxu0 0.0
        %277 = vmatpush1.msra.mxu0 0.0
        %278 = vmatprep.subr.mxu0 0.0
        %279 = vmatpush1.msra.mxu0 0.0
        %280 = vmatprep.subr.mxu0 0.0
        %281 = vmatpush1.msra.mxu0 0.0
        %282 = vmatprep.subr.mxu0 0.0
        %283 = vmatpush1.msra.mxu0 0.0
        %284 = vmatprep.subr.mxu0 0.0
        %285 = vmatpush1.msra.mxu0 0.0
        %286 = vmatprep.subr.mxu0 0.0
        %287 = vmatpush1.msra.mxu0 0.0
        %288 = vmatprep.subr.mxu0 0.0
        %289 = vmatpush1.msra.mxu0 0.0
        %290 = vmatprep.subr.mxu0 0.0
        %291 = vmatpush1.msra.mxu0 0.0
        %292 = vmatprep.subr.mxu0 0.0
        %293 = vmatpush1.msra.mxu0 0.0
        %294 = vmatprep.subr.mxu0 0.0
        %295 = vmatpush1.msra.mxu0 0.0
        %296 = vmatprep.mubr.f32.mxu0 0.0
        %297 = vmatmul.mubr.f32.gmra.mrb[0].mxu0 %v207
        %v298 = vpop.f32.mrb[0].mxu0
        %v299 = vadd.f32 %v230, %v298
        %v300 = vpop.f32.mrb[0].mxu0
        %301 = vmatprep.mubr.f32.mxu0 0.0
        %302 = vmatmul.mubr.f32.gmra.mrb[0].mxu0 %v208
        %v303 = vpop.f32.mrb[0].mxu0
        %v304 = vadd.f32 %v230, %v303
        %v305 = vpop.f32.mrb[0].mxu0
        %306 = vdwg.mxu0
        %307 = vst [vmem:[%s204] sm:$0xff] %v299
        %308 = vst [vmem:[%s204 + $0x20] sm:$0xff] %v304
        %v309 = vld [vmem:[%s178 + $0x8] sm:$0xff]
        %v310 = vld [vmem:[%s178 + $0x28] sm:$0xff]
        %s311 = scalar_lea.vmem [#allocation5], 128
        %v312 = vld [vmem:[%s311] sm:$0xff]
        %v313 = vld [vmem:[%s311 + $0x8] sm:$0xff]
        %v314 = vld [vmem:[%s311 + $0x10] sm:$0xff]
        %v315 = vld [vmem:[%s311 + $0x18] sm:$0xff]
        %v316 = vld [vmem:[%s311 + $0x20] sm:$0xff]
        %v317 = vld [vmem:[%s311 + $0x28] sm:$0xff]
        %v318 = vld [vmem:[%s311 + $0x30] sm:$0xff]
        %v319 = vld [vmem:[%s311 + $0x38] sm:$0xff]
        %v320 = vld [vmem:[%s311 + $0x40] sm:$0xff]
        %v321 = vld [vmem:[%s311 + $0x48] sm:$0xff]
        %v322 = vld [vmem:[%s311 + $0x50] sm:$0xff]
        %v323 = vld [vmem:[%s311 + $0x58] sm:$0xff]
        %v324 = vld [vmem:[%s311 + $0x60] sm:$0xff]
        %v325 = vld [vmem:[%s311 + $0x68] sm:$0xff]
        %v326 = vld [vmem:[%s311 + $0x70] sm:$0xff]
        %v327 = vld [vmem:[%s311 + $0x78] sm:$0xff]
        %v328 = vld [vmem:[%s2 + $0x1] sm:$0x1]
        %v330 = vlaneseq
        %v331 = vshrl.u32 %v330, 7
        %v332 = vsub.s32 0, %v331
        %v333 = vrot.slane %v328, %v332
        %335 = vmatprep.subr.mxu0 0.0
        %336 = vmatpush1.msra.mxu0 %v312
        %337 = vmatprep.subr.mxu0 0.0
        %338 = vmatpush1.msra.mxu0 %v313
        %339 = vmatprep.subr.mxu0 0.0
        %340 = vmatpush1.msra.mxu0 %v314
        %341 = vmatprep.subr.mxu0 0.0
        %342 = vmatpush1.msra.mxu0 %v315
        %343 = vmatprep.subr.mxu0 0.0
        %344 = vmatpush1.msra.mxu0 %v316
        %345 = vmatprep.subr.mxu0 0.0
        %346 = vmatpush1.msra.mxu0 %v317
        %347 = vmatprep.subr.mxu0 0.0
        %348 = vmatpush1.msra.mxu0 %v318
        %349 = vmatprep.subr.mxu0 0.0
        %350 = vmatpush1.msra.mxu0 %v319
        %351 = vmatprep.subr.mxu0 0.0
        %352 = vmatpush1.msra.mxu0 %v320
        %353 = vmatprep.subr.mxu0 0.0
        %354 = vmatpush1.msra.mxu0 %v321
        %355 = vmatprep.subr.mxu0 0.0
        %356 = vmatpush1.msra.mxu0 %v322
        %357 = vmatprep.subr.mxu0 0.0
        %358 = vmatpush1.msra.mxu0 %v323
        %359 = vmatprep.subr.mxu0 0.0
        %360 = vmatpush1.msra.mxu0 %v324
        %361 = vmatprep.subr.mxu0 0.0
        %362 = vmatpush1.msra.mxu0 %v325
        %363 = vmatprep.subr.mxu0 0.0
        %364 = vmatpush1.msra.mxu0 %v326
        %365 = vmatprep.subr.mxu0 0.0
        %366 = vmatpush1.msra.mxu0 %v327
        %367 = vmatprep.subr.mxu0 0.0
        %368 = vmatpush1.msra.mxu0 0.0
        %369 = vmatprep.subr.mxu0 0.0
        %370 = vmatpush1.msra.mxu0 0.0
        %371 = vmatprep.subr.mxu0 0.0
        %372 = vmatpush1.msra.mxu0 0.0
        %373 = vmatprep.subr.mxu0 0.0
        %374 = vmatpush1.msra.mxu0 0.0
        %375 = vmatprep.subr.mxu0 0.0
        %376 = vmatpush1.msra.mxu0 0.0
        %377 = vmatprep.subr.mxu0 0.0
        %378 = vmatpush1.msra.mxu0 0.0
        %379 = vmatprep.subr.mxu0 0.0
        %380 = vmatpush1.msra.mxu0 0.0
        %381 = vmatprep.subr.mxu0 0.0
        %382 = vmatpush1.msra.mxu0 0.0
        %383 = vmatprep.subr.mxu0 0.0
        %384 = vmatpush1.msra.mxu0 0.0
        %385 = vmatprep.subr.mxu0 0.0
        %386 = vmatpush1.msra.mxu0 0.0
        %387 = vmatprep.subr.mxu0 0.0
        %388 = vmatpush1.msra.mxu0 0.0
        %389 = vmatprep.subr.mxu0 0.0
        %390 = vmatpush1.msra.mxu0 0.0
        %391 = vmatprep.subr.mxu0 0.0
        %392 = vmatpush1.msra.mxu0 0.0
        %393 = vmatprep.subr.mxu0 0.0
        %394 = vmatpush1.msra.mxu0 0.0
        %395 = vmatprep.subr.mxu0 0.0
        %396 = vmatpush1.msra.mxu0 0.0
        %397 = vmatprep.subr.mxu0 0.0
        %398 = vmatpush1.msra.mxu0 0.0
        %399 = vmatprep.mubr.f32.mxu0 0.0
        %400 = vmatmul.mubr.f32.gmra.mrb[0].mxu0 %v309
        %v401 = vpop.f32.mrb[0].mxu0
        %v402 = vadd.f32 %v333, %v401
        %v403 = vpop.f32.mrb[0].mxu0
        %404 = vmatprep.mubr.f32.mxu0 0.0
        %405 = vmatmul.mubr.f32.gmra.mrb[0].mxu0 %v310
        %v406 = vpop.f32.mrb[0].mxu0
        %v407 = vadd.f32 %v333, %v406
        %v408 = vpop.f32.mrb[0].mxu0
        %409 = vdwg.mxu0
        %410 = vst [vmem:[%s204 + $0x8] sm:$0xff] %v402
        %411 = vst [vmem:[%s204 + $0x28] sm:$0xff] %v407
        %v412 = vld [vmem:[%s178 + $0x10] sm:$0xff]
        %v413 = vld [vmem:[%s178 + $0x30] sm:$0xff]
        %s414 = scalar_lea.vmem [#allocation5], 256
        %v415 = vld [vmem:[%s414] sm:$0xff]
        %v416 = vld [vmem:[%s414 + $0x8] sm:$0xff]
        %v417 = vld [vmem:[%s414 + $0x10] sm:$0xff]
        %v418 = vld [vmem:[%s414 + $0x18] sm:$0xff]
        %v419 = vld [vmem:[%s414 + $0x20] sm:$0xff]
        %v420 = vld [vmem:[%s414 + $0x28] sm:$0xff]
        %v421 = vld [vmem:[%s414 + $0x30] sm:$0xff]
        %v422 = vld [vmem:[%s414 + $0x38] sm:$0xff]
        %v423 = vld [vmem:[%s414 + $0x40] sm:$0xff]
        %v424 = vld [vmem:[%s414 + $0x48] sm:$0xff]
        %v425 = vld [vmem:[%s414 + $0x50] sm:$0xff]
        %v426 = vld [vmem:[%s414 + $0x58] sm:$0xff]
        %v427 = vld [vmem:[%s414 + $0x60] sm:$0xff]
        %v428 = vld [vmem:[%s414 + $0x68] sm:$0xff]
        %v429 = vld [vmem:[%s414 + $0x70] sm:$0xff]
        %v430 = vld [vmem:[%s414 + $0x78] sm:$0xff]
        %v431 = vld [vmem:[%s2 + $0x2] sm:$0x1]
        %v433 = vlaneseq
        %v434 = vshrl.u32 %v433, 7
        %v435 = vsub.s32 0, %v434
        %v436 = vrot.slane %v431, %v435
        %438 = vmatprep.subr.mxu0 0.0
        %439 = vmatpush1.msra.mxu0 %v415
        %440 = vmatprep.subr.mxu0 0.0
        %441 = vmatpush1.msra.mxu0 %v416
        %442 = vmatprep.subr.mxu0 0.0
        %443 = vmatpush1.msra.mxu0 %v417
        %444 = vmatprep.subr.mxu0 0.0
        %445 = vmatpush1.msra.mxu0 %v418
        %446 = vmatprep.subr.mxu0 0.0
        %447 = vmatpush1.msra.mxu0 %v419
        %448 = vmatprep.subr.mxu0 0.0
        %449 = vmatpush1.msra.mxu0 %v420
        %450 = vmatprep.subr.mxu0 0.0
        %451 = vmatpush1.msra.mxu0 %v421
        %452 = vmatprep.subr.mxu0 0.0
        %453 = vmatpush1.msra.mxu0 %v422
        %454 = vmatprep.subr.mxu0 0.0
        %455 = vmatpush1.msra.mxu0 %v423
        %456 = vmatprep.subr.mxu0 0.0
        %457 = vmatpush1.msra.mxu0 %v424
        %458 = vmatprep.subr.mxu0 0.0
        %459 = vmatpush1.msra.mxu0 %v425
        %460 = vmatprep.subr.mxu0 0.0
        %461 = vmatpush1.msra.mxu0 %v426
        %462 = vmatprep.subr.mxu0 0.0
        %463 = vmatpush1.msra.mxu0 %v427
        %464 = vmatprep.subr.mxu0 0.0
        %465 = vmatpush1.msra.mxu0 %v428
        %466 = vmatprep.subr.mxu0 0.0
        %467 = vmatpush1.msra.mxu0 %v429
        %468 = vmatprep.subr.mxu0 0.0
        %469 = vmatpush1.msra.mxu0 %v430
        %470 = vmatprep.subr.mxu0 0.0
        %471 = vmatpush1.msra.mxu0 0.0
        %472 = vmatprep.subr.mxu0 0.0
        %473 = vmatpush1.msra.mxu0 0.0
        %474 = vmatprep.subr.mxu0 0.0
        %475 = vmatpush1.msra.mxu0 0.0
        %476 = vmatprep.subr.mxu0 0.0
        %477 = vmatpush1.msra.mxu0 0.0
        %478 = vmatprep.subr.mxu0 0.0
        %479 = vmatpush1.msra.mxu0 0.0
        %480 = vmatprep.subr.mxu0 0.0
        %481 = vmatpush1.msra.mxu0 0.0
        %482 = vmatprep.subr.mxu0 0.0
        %483 = vmatpush1.msra.mxu0 0.0
        %484 = vmatprep.subr.mxu0 0.0
        %485 = vmatpush1.msra.mxu0 0.0
        %486 = vmatprep.subr.mxu0 0.0
        %487 = vmatpush1.msra.mxu0 0.0
        %488 = vmatprep.subr.mxu0 0.0
        %489 = vmatpush1.msra.mxu0 0.0
        %490 = vmatprep.subr.mxu0 0.0
        %491 = vmatpush1.msra.mxu0 0.0
        %492 = vmatprep.subr.mxu0 0.0
        %493 = vmatpush1.msra.mxu0 0.0
        %494 = vmatprep.subr.mxu0 0.0
        %495 = vmatpush1.msra.mxu0 0.0
        %496 = vmatprep.subr.mxu0 0.0
        %497 = vmatpush1.msra.mxu0 0.0
        %498 = vmatprep.subr.mxu0 0.0
        %499 = vmatpush1.msra.mxu0 0.0
        %500 = vmatprep.subr.mxu0 0.0
        %501 = vmatpush1.msra.mxu0 0.0
        %502 = vmatprep.mubr.f32.mxu0 0.0
        %503 = vmatmul.mubr.f32.gmra.mrb[0].mxu0 %v412
        %v504 = vpop.f32.mrb[0].mxu0
        %v505 = vadd.f32 %v436, %v504
        %v506 = vpop.f32.mrb[0].mxu0
        %507 = vmatprep.mubr.f32.mxu0 0.0
        %508 = vmatmul.mubr.f32.gmra.mrb[0].mxu0 %v413
        %v509 = vpop.f32.mrb[0].mxu0
        %v510 = vadd.f32 %v436, %v509
        %v511 = vpop.f32.mrb[0].mxu0
        %512 = vdwg.mxu0
        %513 = vst [vmem:[%s204 + $0x10] sm:$0xff] %v505
        %514 = vst [vmem:[%s204 + $0x30] sm:$0xff] %v510
        %v515 = vld [vmem:[%s178 + $0x18] sm:$0xff]
        %v516 = vld [vmem:[%s178 + $0x38] sm:$0xff]
        %s517 = scalar_lea.vmem [#allocation5], 384
        %v518 = vld [vmem:[%s517] sm:$0xff]
        %v519 = vld [vmem:[%s517 + $0x8] sm:$0xff]
        %v520 = vld [vmem:[%s517 + $0x10] sm:$0xff]
        %v521 = vld [vmem:[%s517 + $0x18] sm:$0xff]
        %v522 = vld [vmem:[%s517 + $0x20] sm:$0xff]
        %v523 = vld [vmem:[%s517 + $0x28] sm:$0xff]
        %v524 = vld [vmem:[%s517 + $0x30] sm:$0xff]
        %v525 = vld [vmem:[%s517 + $0x38] sm:$0xff]
        %v526 = vld [vmem:[%s517 + $0x40] sm:$0xff]
        %v527 = vld [vmem:[%s517 + $0x48] sm:$0xff]
        %v528 = vld [vmem:[%s517 + $0x50] sm:$0xff]
        %v529 = vld [vmem:[%s517 + $0x58] sm:$0xff]
        %v530 = vld [vmem:[%s517 + $0x60] sm:$0xff]
        %v531 = vld [vmem:[%s517 + $0x68] sm:$0xff]
        %v532 = vld [vmem:[%s517 + $0x70] sm:$0xff]
        %v533 = vld [vmem:[%s517 + $0x78] sm:$0xff]
        %v534 = vld [vmem:[%s2 + $0x3] sm:$0x1]
        %v536 = vlaneseq
        %v537 = vshrl.u32 %v536, 7
        %v538 = vsub.s32 0, %v537
        %v539 = vrot.slane %v534, %v538
        %541 = vmatprep.subr.mxu0 0.0
        %542 = vmatpush1.msra.mxu0 %v518
        %543 = vmatprep.subr.mxu0 0.0
        %544 = vmatpush1.msra.mxu0 %v519
        %545 = vmatprep.subr.mxu0 0.0
        %546 = vmatpush1.msra.mxu0 %v520
        %547 = vmatprep.subr.mxu0 0.0
        %548 = vmatpush1.msra.mxu0 %v521
        %549 = vmatprep.subr.mxu0 0.0
        %550 = vmatpush1.msra.mxu0 %v522
        %551 = vmatprep.subr.mxu0 0.0
        %552 = vmatpush1.msra.mxu0 %v523
        %553 = vmatprep.subr.mxu0 0.0
        %554 = vmatpush1.msra.mxu0 %v524
        %555 = vmatprep.subr.mxu0 0.0
        %556 = vmatpush1.msra.mxu0 %v525
        %557 = vmatprep.subr.mxu0 0.0
        %558 = vmatpush1.msra.mxu0 %v526
        %559 = vmatprep.subr.mxu0 0.0
        %560 = vmatpush1.msra.mxu0 %v527
        %561 = vmatprep.subr.mxu0 0.0
        %562 = vmatpush1.msra.mxu0 %v528
        %563 = vmatprep.subr.mxu0 0.0
        %564 = vmatpush1.msra.mxu0 %v529
        %565 = vmatprep.subr.mxu0 0.0
        %566 = vmatpush1.msra.mxu0 %v530
        %567 = vmatprep.subr.mxu0 0.0
        %568 = vmatpush1.msra.mxu0 %v531
        %569 = vmatprep.subr.mxu0 0.0
        %570 = vmatpush1.msra.mxu0 %v532
        %571 = vmatprep.subr.mxu0 0.0
        %572 = vmatpush1.msra.mxu0 %v533
        %573 = vmatprep.subr.mxu0 0.0
        %574 = vmatpush1.msra.mxu0 0.0
        %575 = vmatprep.subr.mxu0 0.0
        %576 = vmatpush1.msra.mxu0 0.0
        %577 = vmatprep.subr.mxu0 0.0
        %578 = vmatpush1.msra.mxu0 0.0
        %579 = vmatprep.subr.mxu0 0.0
        %580 = vmatpush1.msra.mxu0 0.0
        %581 = vmatprep.subr.mxu0 0.0
        %582 = vmatpush1.msra.mxu0 0.0
        %583 = vmatprep.subr.mxu0 0.0
        %584 = vmatpush1.msra.mxu0 0.0
        %585 = vmatprep.subr.mxu0 0.0
        %586 = vmatpush1.msra.mxu0 0.0
        %587 = vmatprep.subr.mxu0 0.0
        %588 = vmatpush1.msra.mxu0 0.0
        %589 = vmatprep.subr.mxu0 0.0
        %590 = vmatpush1.msra.mxu0 0.0
        %591 = vmatprep.subr.mxu0 0.0
        %592 = vmatpush1.msra.mxu0 0.0
        %593 = vmatprep.subr.mxu0 0.0
        %594 = vmatpush1.msra.mxu0 0.0
        %595 = vmatprep.subr.mxu0 0.0
        %596 = vmatpush1.msra.mxu0 0.0
        %597 = vmatprep.subr.mxu0 0.0
        %598 = vmatpush1.msra.mxu0 0.0
        %599 = vmatprep.subr.mxu0 0.0
        %600 = vmatpush1.msra.mxu0 0.0
        %601 = vmatprep.subr.mxu0 0.0
        %602 = vmatpush1.msra.mxu0 0.0
        %603 = vmatprep.subr.mxu0 0.0
        %604 = vmatpush1.msra.mxu0 0.0
        %605 = vmatprep.mubr.f32.mxu0 0.0
        %606 = vmatmul.mubr.f32.gmra.mrb[0].mxu0 %v515
        %v607 = vpop.f32.mrb[0].mxu0
        %v608 = vadd.f32 %v539, %v607
        %v609 = vpop.f32.mrb[0].mxu0
        %610 = vmatprep.mubr.f32.mxu0 0.0
        %611 = vmatmul.mubr.f32.gmra.mrb[0].mxu0 %v516
        %v612 = vpop.f32.mrb[0].mxu0
        %v613 = vadd.f32 %v539, %v612
        %v614 = vpop.f32.mrb[0].mxu0
        %615 = vdwg.mxu0
        %616 = vst [vmem:[%s204 + $0x18] sm:$0xff] %v608
        %617 = vst [vmem:[%s204 + $0x38] sm:$0xff] %v613
        %s618 = sand.u32 %s97, 1
        %s619 = scalar_lea.sflag [#allocation4], %s618
        %s620 = sand.u32 %s97, 1
        %s621 = smul.addr %s620, 64
        %s622 = scalar_lea.vmem [#allocation7], %s621
        // Predicated region
        $region41: #{tpu_custom_call.1} parent=31 // pred_check
          %p623 = pneg %p107
        $region42: #{tpu_custom_call.1} parent=31 // pred_check_branch
          %625 = sbr.rel (%p623) target = $region44
        $region43: #{tpu_custom_call.1} parent=31 // pred_region
          %s626 = smul.u32 2, %s21
          %s628 = ssub.s32 1024, 1024
          %629 = vsyncadd %s619, %s628
          %s630 = smul.addr %s626, 4
          %s631 = smul.addr %s630, 128
          %s632 = scalar_lea.hbm %s3, %s631
          %s633 = sshll.u32 %s622, 4
          %s634 = int_to_ptr.vmem [resolvable:$true] %s633
          %639 = dma.vmem_to_hbm [thread:$0]  %s634, 1024, %s632, %s619, 512, 512, 32
        $region44: #{tpu_custom_call.1} parent=31 // pred_fallthru
          _
      $region32: #{tpu_custom_call.1} parent=5 // pred_fallthru
        _
      %p640 = scmp.le.s32.totalorder 2, %s16
      // Predicated region
      $region45: #{tpu_custom_call.1} parent=5 // pred_check
        %p641 = pneg %p640
      $region46: #{tpu_custom_call.1} parent=5 // pred_check_branch
        %643 = sbr.rel (%p641) target = $region48
      $region47: #{tpu_custom_call.1} parent=5 // pred_region
        %s644 = ssub.s32 %s16, 2
        // Predicated region
        $region49: #{tpu_custom_call.1} parent=47 // pred_check
          %p645 = pneg %p113
        $region50: #{tpu_custom_call.1} parent=47 // pred_check_branch
          %647 = sbr.rel (%p645) target = $region52
        $region51: #{tpu_custom_call.1} parent=47 // pred_region
          %s648 = sand.u32 %s98, 1
          %s649 = scalar_lea.sflag [#allocation4], %s648
          %s650 = sand.u32 %s98, 1
          %s651 = smul.addr %s650, 64
          %s652 = scalar_lea.vmem [#allocation7], %s651
          %653 = dma.done %s649, 1024
        $region52: #{tpu_custom_call.1} parent=47 // pred_fallthru
          _
      $region48: #{tpu_custom_call.1} parent=5 // pred_fallthru
        _
    $region6: #{tpu_custom_call.1} parent=1 // loop_footer
      %s20 = sadd.s32 1, %s16
    $region7: #{tpu_custom_call.1} parent=1 // loop_footer_branch
      %15 = sbr.rel target = $region3
    $region8: #{tpu_custom_call.1} parent=1 // loop_exit
      _
    %654 = vsyncpa [#allocation3], 1
    %s655 = scalar_lea.sflag [#allocation3], 1
    %656 = vsyncpa %s655, 1
    %657 = vsyncpa [#allocation6], 1
    %658 = vsyncpa [#allocation4], 1
    %s659 = scalar_lea.sflag [#allocation4], 1
    %660 = vsyncpa %s659, 1

</llo_original>
